<compile_context>
chip_gen: v7x
topology: tpu7x:2x2x1
jax: 0.10.0
libtpu: 0.0.40
codegen_flags: <defaults>
</compile_context>

<pallas_src>
import functools

import jax
import jax.numpy as jnp
import numpy as np
from jax.experimental import pallas as pl
from jax.experimental.pallas import tpu as pltpu

LANE = 128      # TPU lane width  (last dim)
SUBLANE = 8     # TPU sublane width (second-to-last dim)


# ----------------------------------------------------------------------------
# small helpers
# ----------------------------------------------------------------------------
def _round_up(v, m):
    return ((v + m - 1) // m) * m


def _pad2(a, rows, cols):
    r, c = a.shape
    return jnp.pad(a, ((0, rows - r), (0, cols - c)))


def _device_kind():
    try:
        return jax.devices()[0].device_kind.lower()
    except Exception:
        return ""


def _is_v7():
    k = _device_kind()
    return ("v7" in k) or ("tpu7" in k)


def _default_vmem_limit_bytes():
    if _is_v7():
        return 48 * 1024 * 1024      # v7x: 64 MiB VMEM per TensorCore -> headroom
    return 64 * 1024 * 1024          # v5e/v6e: 128 MiB physical


def _default_tile_cap():
    # Per-grid-step overhead is ~0.35us; v5e/v6e have 128 MiB VMEM so big
    # streamed tiles pay off.  v7x only has 64 MiB -> keep the tile smaller.
    return 512 if _is_v7() else 2048


def _pick_row_tile(m_rows, d_p, h1_p, h2_p, stream_itemsize, weight_itemsize,
                   vmem_limit_bytes, tile_cap):
    """Largest row tile (multiple of 8, <= tile_cap) such that the resident
    (double-buffered) weights + double-buffered streamed inputs + f32
    intermediates stay within the scoped VMEM limit."""
    tile = min(tile_cap, _round_up(max(m_rows, 1), SUBLANE))
    tile = max(SUBLANE, (tile // SUBLANE) * SUBLANE)

    # VMEM-resident weights/biases (pipeline still double-buffers them).
    weights = 2 * (d_p * h1_p + h1_p * h2_p + h2_p * d_p) * weight_itemsize
    weights += 2 * (h1_p + h2_p + d_p) * 4                # f32 biases

    def need(t):
        streamed = 2 * 2 * t * d_p * stream_itemsize      # x_in + x_tgt, double buffered
        interm = t * (h1_p + h2_p + 2 * d_p) * 4          # h / m / rec / y f32 temps
        out = 2 * t * 4                                    # per-row loss block
        return weights + streamed + interm + out

    while tile > SUBLANE and need(tile) > (vmem_limit_bytes * 3) // 4:
        tile = max(SUBLANE, ((tile // 2) // SUBLANE) * SUBLANE)
    return tile


# ----------------------------------------------------------------------------
# fused kernel: encoder MLP -> (collapsed e2d chain) -> decoder MLP -> per-row
# SCE term.  Each grid step writes its own (tile, 1) output block, so the row
# axis is fully "parallel" (megacore-friendly on v7x).
# ----------------------------------------------------------------------------
def _fused_premodel_kernel(x_in_ref, x_tgt_ref, w1_ref, b1_ref, wmid_ref,
                           bmid_ref, w2_ref, b2_ref, slopes_ref, out_ref,
                           *, alpha):
    a_enc = slopes_ref[0]            # PReLU slopes, SMEM scalars
    a_dec = slopes_ref[1]

    # ---- encoder: Linear(in, 2h) -> PReLU ------------------------------------
    x = x_in_ref[...]                                    # bf16 rows
    h = jnp.dot(x, w1_ref[...], preferred_element_type=jnp.float32) + b1_ref[...]
    h = jnp.where(h >= 0.0, h, a_enc * h)
    # TODO(synk): nn.Dropout(0.2) (training-mode mask) omitted — eval-mode forward.

    # ---- enc Linear2 -> encoder_to_decoder -> dec Linear1 (collapsed weight) --
    m = jnp.dot(h.astype(wmid_ref.dtype), wmid_ref[...],
                preferred_element_type=jnp.float32) + bmid_ref[...]

    # ---- decoder: PReLU -> Linear(2h, in) -------------------------------------
    m = jnp.where(m >= 0.0, m, a_dec * m)
    # TODO(synk): decoder nn.Dropout(0.2) omitted as well (eval-mode forward).
    rec = jnp.dot(m.astype(w2_ref.dtype), w2_ref[...],
                  preferred_element_type=jnp.float32) + b2_ref[...]

    # ---- per-row SCE term (f32 math; targets streamed as bf16) ----------------
    # F.normalize(v, eps=1e-12): v / max(||v||, eps) == v * rsqrt(max(||v||^2, eps^2))
    y = x_tgt_ref[...].astype(jnp.float32)
    eps2 = jnp.float32(1e-24)
    inv_r = jax.lax.rsqrt(jnp.maximum(jnp.sum(rec * rec, axis=-1, keepdims=True), eps2))
    inv_y = jax.lax.rsqrt(jnp.maximum(jnp.sum(y * y, axis=-1, keepdims=True), eps2))
    cos = jnp.sum(rec * y, axis=-1, keepdims=True) * inv_r * inv_y
    d = 1.0 - cos                                             # (tile, 1)

    if float(alpha) == int(alpha) and int(alpha) >= 1:        # static python branch
        p = d
        for _ in range(int(alpha) - 1):
            p = p * d
    else:
        p = jnp.power(d, jnp.float32(alpha))

    # Padded rows produce garbage (finite) values; the wrapper slices them off
    # before the mean, so no in-kernel masking is needed.
    out_ref[...] = p


# ----------------------------------------------------------------------------
# encoding_mask_noise glue (plain JAX) — applied directly on the masked rows
# ----------------------------------------------------------------------------
def _mask_inputs(params, x, key, mask_rate, replace_rate):
    n, _ = x.shape
    num_mask = int(mask_rate * n)                 # static, matches torch int(...)
    k1, k2, k3 = jax.random.split(key, 3)
    perm = jax.random.permutation(k1, n)
    mask_nodes = perm[:num_mask]

    x_init = x[mask_nodes]                        # loss targets (M, D)
    use_x_m = x_init                              # masked-node encoder inputs (M, D)
    if replace_rate > 0:
        num_noise = int(replace_rate * num_mask)
        num_token = int((1.0 - replace_rate) * num_mask)
        perm_mask = jax.random.permutation(k2, num_mask)
        token_pos = perm_mask[:num_token]
        use_x_m = use_x_m.at[token_pos].set(0.0)
        if num_noise > 0:
            noise_pos = perm_mask[num_mask - num_noise:]
            noise_src = jax.random.permutation(k3, n)[:num_noise]
            use_x_m = use_x_m.at[noise_pos].set(x[noise_src])
    else:
        token_pos = jnp.arange(num_mask)
        use_x_m = jnp.zeros_like(use_x_m)
    use_x_m = use_x_m.at[token_pos].add(params["enc_mask_token"][0])
    return use_x_m, x_init, num_mask


# ----------------------------------------------------------------------------
# PreModel.mask_attr_prediction forward ('mlp' branch) -> scalar SCE loss
# ----------------------------------------------------------------------------
def premodel_forward(params, x, key, mask_rate=0.3, replace_rate=0.1,
                     alpha_l=2, tile_rows=None, matmul_dtype=None):
    _, d_in = x.shape
    use_x_m, x_init, num_mask = _mask_inputs(params, x, key, mask_rate, replace_rate)
    if num_mask == 0:
        return jnp.float32(0.0)

    # bf16 MXU inputs on all generations (f32 accumulate + f32 elementwise in
    # the kernel); halves HBM streaming for the bandwidth-bound regime.
    if matmul_dtype is None:
        matmul_dtype = jnp.bfloat16
    stream_tgt_dtype = jnp.bfloat16
    vmem_limit = _default_vmem_limit_bytes()
    if tile_rows is None:
        tile_rows = _default_tile_cap()

    # ---- collapse enc_w2 @ e2d_w @ dec_w1 (no nonlinearity between them) ------
    w_mid = params["enc_w2"] @ params["e2d_w"] @ params["dec_w1"]
    b_mid = params["enc_b2"] @ params["e2d_w"] @ params["dec_w1"] + params["dec_b1"]

    # ---- zero-pad feature dims to the 128-lane width (exact) ------------------
    h1 = params["enc_w1"].shape[1]                # 2 * num_hidden (encoder)
    h2 = params["dec_w1"].shape[1]                # 2 * num_hidden (decoder)
    d_p = _round_up(d_in, LANE)
    h1_p = _round_up(h1, LANE)
    h2_p = _round_up(h2, LANE)

    # cast BEFORE padding so the padded HBM copies are written at 2 B/elem
    w1 = _pad2(params["enc_w1"].astype(matmul_dtype), d_p, h1_p)
    b1 = _pad2(params["enc_b1"].reshape(1, -1).astype(jnp.float32), 1, h1_p)
    wm = _pad2(w_mid.astype(matmul_dtype), h1_p, h2_p)
    bm = _pad2(b_mid.reshape(1, -1).astype(jnp.float32), 1, h2_p)
    w2 = _pad2(params["dec_w2"].astype(matmul_dtype), h2_p, d_p)
    b2 = _pad2(params["dec_b2"].reshape(1, -1).astype(jnp.float32), 1, d_p)
    slopes = jnp.stack([params["enc_prelu"], params["dec_prelu"]]).astype(jnp.float32)

    # ---- row-tile the masked-node rows ----------------------------------------
    item = jnp.dtype(matmul_dtype).itemsize
    tile = _pick_row_tile(num_mask, d_p, h1_p, h2_p, item, item,
                          vmem_limit, tile_rows)
    rows_p = _round_up(num_mask, tile)
    x_in = _pad2(use_x_m.astype(matmul_dtype), rows_p, d_p)        # streamed (MXU dtype)
    x_tgt = _pad2(x_init.astype(stream_tgt_dtype), rows_p, d_p)    # streamed bf16 targets

    grid = (rows_p // tile,)
    kernel = functools.partial(_fused_premodel_kernel, alpha=alpha_l)

    per_row = pl.pallas_call(
        kernel,
        out_shape=jax.ShapeDtypeStruct((rows_p, 1), jnp.float32),
        grid=grid,
        in_specs=[
            pl.BlockSpec((tile, d_p), lambda i: (i, 0)),         # masked/noised inputs (streamed)
            pl.BlockSpec((tile, d_p), lambda i: (i, 0)),         # loss targets         (streamed)
            pl.BlockSpec((d_p, h1_p), lambda i: (0, 0)),         # enc W1  (VMEM-resident)
            pl.BlockSpec((1, h1_p), lambda i: (0, 0)),           # enc b1
            pl.BlockSpec((h1_p, h2_p), lambda i: (0, 0)),        # collapsed W2@We2d@Wd1
            pl.BlockSpec((1, h2_p), lambda i: (0, 0)),           # collapsed bias
            pl.BlockSpec((h2_p, d_p), lambda i: (0, 0)),         # dec W2
            pl.BlockSpec((1, d_p), lambda i: (0, 0)),            # dec b2
            pl.BlockSpec(memory_space=pltpu.MemorySpace.SMEM),   # PReLU slopes (2,)
        ],
        out_specs=pl.BlockSpec((tile, 1), lambda i: (i, 0)),     # per-row SCE terms
        compiler_params=pltpu.CompilerParams(
            dimension_semantics=("parallel",),                   # tiles are independent -> megacore on v7x
            vmem_limit_bytes=vmem_limit),
    )(x_in, x_tgt, w1, b1, wm, bm, w2, b2, slopes)

    # mean over the valid masked rows (padded rows sliced away)
    return jnp.sum(per_row[:num_mask, 0]) / jnp.float32(num_mask)


# ----------------------------------------------------------------------------
# plain-JAX reference (same glue, un-fused f32 math) for self-checking
# ----------------------------------------------------------------------------
def premodel_reference_loss(params, x, key, mask_rate=0.3, replace_rate=0.1, alpha_l=2):
    use_x_m, x_init, num_mask = _mask_inputs(params, x, key, mask_rate, replace_rate)
    if num_mask == 0:
        return jnp.float32(0.0)

    def prelu(v, a):
        return jnp.where(v >= 0.0, v, a * v)

    h = prelu(use_x_m @ params["enc_w1"] + params["enc_b1"], params["enc_prelu"])
    enc_rep = h @ params["enc_w2"] + params["enc_b2"]
    rep = enc_rep @ params["e2d_w"]
    h2 = prelu(rep @ params["dec_w1"] + params["dec_b1"], params["dec_prelu"])
    rec = h2 @ params["dec_w2"] + params["dec_b2"]

    def norm(v):
        return v / jnp.maximum(jnp.linalg.norm(v, axis=-1, keepdims=True), 1e-12)

    d = 1.0 - jnp.sum(norm(rec) * norm(x_init), axis=-1)
    return jnp.mean(d ** alpha_l)


# ----------------------------------------------------------------------------
# deterministic parameter init (PyTorch nn.Linear-style uniform bounds)
# ----------------------------------------------------------------------------
def init_linear(key, in_dim, out_dim):
    kw, kb = jax.random.split(key)
    bound = 1.0 / np.sqrt(in_dim)
    w = jax.random.uniform(kw, (in_dim, out_dim), jnp.float32, -bound, bound)
    b = jax.random.uniform(kb, (out_dim,), jnp.float32, -bound, bound)
    return w, b


def init_params(key, in_dim, num_hidden, out_dim):
    keys = jax.random.split(key, 6)
    enc_w1, enc_b1 = init_linear(keys[0], in_dim, num_hidden * 2)
    enc_w2, enc_b2 = init_linear(keys[1], num_hidden * 2, out_dim)
    e2d_w, _ = init_linear(keys[2], out_dim, out_dim)            # Linear(out, out, bias=False)
    dec_w1, dec_b1 = init_linear(keys[3], out_dim, num_hidden * 2)
    dec_w2, dec_b2 = init_linear(keys[4], num_hidden * 2, in_dim)
    return {
        "enc_w1": enc_w1, "enc_b1": enc_b1,
        "enc_prelu": jnp.asarray(0.25, jnp.float32),             # nn.PReLU default
        "enc_w2": enc_w2, "enc_b2": enc_b2,
        "e2d_w": e2d_w,
        "dec_w1": dec_w1, "dec_b1": dec_b1,
        "dec_prelu": jnp.asarray(0.25, jnp.float32),
        "dec_w2": dec_w2, "dec_b2": dec_b2,
        "enc_mask_token": jnp.zeros((1, in_dim), jnp.float32),   # nn.Parameter(zeros)
    }


if __name__ == "__main__":
    # small, module-consistent shapes
    N_NODES = 64
    IN_DIM = 32
    NUM_HIDDEN = 32
    OUT_DIM = 32

    root = jax.random.PRNGKey(0)
    k_param, k_feat, k_mask = jax.random.split(root, 3)

    params = init_params(k_param, IN_DIM, NUM_HIDDEN, OUT_DIM)
    x = jax.random.normal(k_feat, (N_NODES, IN_DIM), jnp.float32)

    loss = premodel_forward(params, x, k_mask,
                            mask_rate=0.3, replace_rate=0.1, alpha_l=2)
    loss = jax.block_until_ready(loss)

    ref = jax.block_until_ready(
        premodel_reference_loss(params, x, k_mask,
                                mask_rate=0.3, replace_rate=0.1, alpha_l=2))

    assert jnp.isfinite(loss), loss
    assert abs(float(loss) - float(ref)) <= 0.05 + 0.05 * abs(float(ref)), (float(loss), float(ref))
    print("KERNEL_OK")
</pallas_src>

<mosaic_0001>
module attributes {stable_mosaic.version = 11 : i64} {
  func.func @_fused_premodel_kernel(%arg0: i32, %arg1: memref<24x128xbf16, #tpu.memory_space<vmem>>, %arg2: memref<24x128xbf16, #tpu.memory_space<vmem>>, %arg3: memref<128x128xbf16, #tpu.memory_space<vmem>>, %arg4: memref<1x128xf32, #tpu.memory_space<vmem>>, %arg5: memref<128x128xbf16, #tpu.memory_space<vmem>>, %arg6: memref<1x128xf32, #tpu.memory_space<vmem>>, %arg7: memref<128x128xbf16, #tpu.memory_space<vmem>>, %arg8: memref<1x128xf32, #tpu.memory_space<vmem>>, %arg9: memref<2xf32, #tpu.memory_space<smem>>, %arg10: memref<24x1xf32, #tpu.memory_space<vmem>>) attributes {dimension_semantics = [#tpu.dimension_semantics<parallel>], iteration_bounds = array<i64: 1>, scalar_prefetch = 0 : i64, scratch_operands = 0 : i64, tpu.core_type = #tpu.core_type<tc>, window_params = [{transform_indices = @transform_0, window_bounds = array<i64: 24, 128>}, {transform_indices = @transform_1, window_bounds = array<i64: 24, 128>}, {pipeline_mode = #tpu.pipeline_mode<synchronous>, transform_indices = @transform_2, window_bounds = array<i64: 128, 128>}, {pipeline_mode = #tpu.pipeline_mode<synchronous>, transform_indices = @transform_3, window_bounds = array<i64: 1, 128>}, {pipeline_mode = #tpu.pipeline_mode<synchronous>, transform_indices = @transform_4, window_bounds = array<i64: 128, 128>}, {pipeline_mode = #tpu.pipeline_mode<synchronous>, transform_indices = @transform_5, window_bounds = array<i64: 1, 128>}, {pipeline_mode = #tpu.pipeline_mode<synchronous>, transform_indices = @transform_6, window_bounds = array<i64: 128, 128>}, {pipeline_mode = #tpu.pipeline_mode<synchronous>, transform_indices = @transform_7, window_bounds = array<i64: 1, 128>}, {transform_indices = @transform_8, window_bounds = array<i64: 2>}, {transform_indices = @transform_9, window_bounds = array<i64: 24, 1>}]} {
    %c0 = arith.constant 0 : index
    %0 = memref.load %arg9[%c0] : memref<2xf32, #tpu.memory_space<smem>>
    %c1 = arith.constant 1 : index
    %1 = memref.load %arg9[%c1] : memref<2xf32, #tpu.memory_space<smem>>
    %c0_0 = arith.constant 0 : index
    %c0_1 = arith.constant 0 : index
    %2 = vector.load %arg1[%c0_0, %c0_1] : memref<24x128xbf16, #tpu.memory_space<vmem>>, vector<24x128xbf16>
    %c0_2 = arith.constant 0 : index
    %c0_3 = arith.constant 0 : index
    %3 = vector.load %arg3[%c0_2, %c0_3] : memref<128x128xbf16, #tpu.memory_space<vmem>>, vector<128x128xbf16>
    %cst = arith.constant dense<0.000000e+00> : vector<24x128xf32>
    %4 = tpu.matmul %2, %3, %cst {dimension_numbers = #tpu.dot_dimension_numbers<[1], [0], [0], [1], [0, 0, 1, 1], [], []>} : vector<24x128xbf16>, vector<128x128xbf16>, vector<24x128xf32> -> vector<24x128xf32>
    %c0_4 = arith.constant 0 : index
    %c0_5 = arith.constant 0 : index
    %5 = vector.load %arg4[%c0_4, %c0_5] : memref<1x128xf32, #tpu.memory_space<vmem>>, vector<1x128xf32>
    %6 = vector.broadcast %5 : vector<1x128xf32> to vector<24x128xf32>
    %7 = arith.addf %4, %6 : vector<24x128xf32>
    %cst_6 = arith.constant 0.000000e+00 : f32
    %8 = vector.broadcast %cst_6 : f32 to vector<24x128xf32>
    %9 = arith.cmpf oge, %7, %8 : vector<24x128xf32>
    %10 = vector.broadcast %0 : f32 to vector<24x128xf32>
    %11 = arith.mulf %10, %7 : vector<24x128xf32>
    %12 = arith.select %9, %7, %11 : vector<24x128xi1>, vector<24x128xf32>
    %13 = arith.truncf %12 : vector<24x128xf32> to vector<24x128xbf16>
    %c0_7 = arith.constant 0 : index
    %c0_8 = arith.constant 0 : index
    %14 = vector.load %arg5[%c0_7, %c0_8] : memref<128x128xbf16, #tpu.memory_space<vmem>>, vector<128x128xbf16>
    %cst_9 = arith.constant dense<0.000000e+00> : vector<24x128xf32>
    %15 = tpu.matmul %13, %14, %cst_9 {dimension_numbers = #tpu.dot_dimension_numbers<[1], [0], [0], [1], [0, 0, 1, 1], [], []>} : vector<24x128xbf16>, vector<128x128xbf16>, vector<24x128xf32> -> vector<24x128xf32>
    %c0_10 = arith.constant 0 : index
    %c0_11 = arith.constant 0 : index
    %16 = vector.load %arg6[%c0_10, %c0_11] : memref<1x128xf32, #tpu.memory_space<vmem>>, vector<1x128xf32>
    %17 = vector.broadcast %16 : vector<1x128xf32> to vector<24x128xf32>
    %18 = arith.addf %15, %17 : vector<24x128xf32>
    %cst_12 = arith.constant 0.000000e+00 : f32
    %19 = vector.broadcast %cst_12 : f32 to vector<24x128xf32>
    %20 = arith.cmpf oge, %18, %19 : vector<24x128xf32>
    %21 = vector.broadcast %1 : f32 to vector<24x128xf32>
    %22 = arith.mulf %21, %18 : vector<24x128xf32>
    %23 = arith.select %20, %18, %22 : vector<24x128xi1>, vector<24x128xf32>
    %24 = arith.truncf %23 : vector<24x128xf32> to vector<24x128xbf16>
    %c0_13 = arith.constant 0 : index
    %c0_14 = arith.constant 0 : index
    %25 = vector.load %arg7[%c0_13, %c0_14] : memref<128x128xbf16, #tpu.memory_space<vmem>>, vector<128x128xbf16>
    %cst_15 = arith.constant dense<0.000000e+00> : vector<24x128xf32>
    %26 = tpu.matmul %24, %25, %cst_15 {dimension_numbers = #tpu.dot_dimension_numbers<[1], [0], [0], [1], [0, 0, 1, 1], [], []>} : vector<24x128xbf16>, vector<128x128xbf16>, vector<24x128xf32> -> vector<24x128xf32>
    %c0_16 = arith.constant 0 : index
    %c0_17 = arith.constant 0 : index
    %27 = vector.load %arg8[%c0_16, %c0_17] : memref<1x128xf32, #tpu.memory_space<vmem>>, vector<1x128xf32>
    %28 = vector.broadcast %27 : vector<1x128xf32> to vector<24x128xf32>
    %29 = arith.addf %26, %28 : vector<24x128xf32>
    %c0_18 = arith.constant 0 : index
    %c0_19 = arith.constant 0 : index
    %30 = vector.load %arg2[%c0_18, %c0_19] : memref<24x128xbf16, #tpu.memory_space<vmem>>, vector<24x128xbf16>
    %31 = arith.extf %30 : vector<24x128xbf16> to vector<24x128xf32>
    %32 = arith.mulf %29, %29 : vector<24x128xf32>
    %cst_20 = arith.constant dense<0.000000e+00> : vector<24xf32>
    %33 = vector.multi_reduction <add>, %32, %cst_20 [1] : vector<24x128xf32> to vector<24xf32>
    %34 = vector.shape_cast %33 : vector<24xf32> to vector<24x1xf32>
    %cst_21 = arith.constant 1.000000e-24 : f32
    %35 = vector.broadcast %cst_21 : f32 to vector<24x1xf32>
    %36 = arith.maximumf %34, %35 : vector<24x1xf32>
    %37 = math.rsqrt %36 : vector<24x1xf32>
    %38 = arith.mulf %31, %31 : vector<24x128xf32>
    %cst_22 = arith.constant dense<0.000000e+00> : vector<24xf32>
    %39 = vector.multi_reduction <add>, %38, %cst_22 [1] : vector<24x128xf32> to vector<24xf32>
    %40 = vector.shape_cast %39 : vector<24xf32> to vector<24x1xf32>
    %cst_23 = arith.constant 1.000000e-24 : f32
    %41 = vector.broadcast %cst_23 : f32 to vector<24x1xf32>
    %42 = arith.maximumf %40, %41 : vector<24x1xf32>
    %43 = math.rsqrt %42 : vector<24x1xf32>
    %44 = arith.mulf %29, %31 : vector<24x128xf32>
    %cst_24 = arith.constant dense<0.000000e+00> : vector<24xf32>
    %45 = vector.multi_reduction <add>, %44, %cst_24 [1] : vector<24x128xf32> to vector<24xf32>
    %46 = vector.shape_cast %45 : vector<24xf32> to vector<24x1xf32>
    %47 = arith.mulf %46, %37 : vector<24x1xf32>
    %48 = arith.mulf %47, %43 : vector<24x1xf32>
    %cst_25 = arith.constant 1.000000e+00 : f32
    %49 = vector.broadcast %cst_25 : f32 to vector<24x1xf32>
    %50 = arith.subf %49, %48 : vector<24x1xf32>
    %51 = arith.mulf %50, %50 : vector<24x1xf32>
    %c0_26 = arith.constant 0 : index
    %c0_27 = arith.constant 0 : index
    %52 = vector.load %arg10[%c0_26, %c0_27] : memref<24x1xf32, #tpu.memory_space<vmem>>, vector<24x1xf32>
    tpu.vector_store %arg10[%c0_26, %c0_27], %51 {strides = array<i32>} : memref<24x1xf32, #tpu.memory_space<vmem>>, vector<24x1xf32>,
    return
  }
  func.func @transform_0(%arg0: i32) -> (i32, i32) {
    %c0_i32 = arith.constant 0 : i32
    %c0_i32_0 = arith.constant 0 : i32
    return %arg0, %c0_i32 : i32, i32
  }
  func.func @transform_1(%arg0: i32) -> (i32, i32) {
    %c0_i32 = arith.constant 0 : i32
    %c0_i32_0 = arith.constant 0 : i32
    return %arg0, %c0_i32 : i32, i32
  }
  func.func @transform_2(%arg0: i32) -> (i32, i32) {
    %c0_i32 = arith.constant 0 : i32
    %c0_i32_0 = arith.constant 0 : i32
    %c0_i32_1 = arith.constant 0 : i32
    return %c0_i32, %c0_i32_0 : i32, i32
  }
  func.func @transform_3(%arg0: i32) -> (i32, i32) {
    %c0_i32 = arith.constant 0 : i32
    %c0_i32_0 = arith.constant 0 : i32
    %c0_i32_1 = arith.constant 0 : i32
    return %c0_i32, %c0_i32_0 : i32, i32
  }
  func.func @transform_4(%arg0: i32) -> (i32, i32) {
    %c0_i32 = arith.constant 0 : i32
    %c0_i32_0 = arith.constant 0 : i32
    %c0_i32_1 = arith.constant 0 : i32
    return %c0_i32, %c0_i32_0 : i32, i32
  }
  func.func @transform_5(%arg0: i32) -> (i32, i32) {
    %c0_i32 = arith.constant 0 : i32
    %c0_i32_0 = arith.constant 0 : i32
    %c0_i32_1 = arith.constant 0 : i32
    return %c0_i32, %c0_i32_0 : i32, i32
  }
  func.func @transform_6(%arg0: i32) -> (i32, i32) {
    %c0_i32 = arith.constant 0 : i32
    %c0_i32_0 = arith.constant 0 : i32
    %c0_i32_1 = arith.constant 0 : i32
    return %c0_i32, %c0_i32_0 : i32, i32
  }
  func.func @transform_7(%arg0: i32) -> (i32, i32) {
    %c0_i32 = arith.constant 0 : i32
    %c0_i32_0 = arith.constant 0 : i32
    %c0_i32_1 = arith.constant 0 : i32
    return %c0_i32, %c0_i32_0 : i32, i32
  }
  func.func @transform_8(%arg0: i32) -> i32 {
    %c0_i32 = arith.constant 0 : i32
    %c0_i32_0 = arith.constant 0 : i32
    return %c0_i32 : i32
  }
  func.func @transform_9(%arg0: i32) -> (i32, i32) {
    %c0_i32 = arith.constant 0 : i32
    %c0_i32_0 = arith.constant 0 : i32
    return %arg0, %c0_i32 : i32, i32
  }
}

</mosaic_0001>

<llo_original>
// kernel: tpu_custom_call.1
$region0: #{tpu_custom_call.1}
  #allocation0 [shape = 'u32[]', space=smem, size = 0x4, offset = 0x4, fixed_abs, tag = 'smem constant byte address 0x4 - core index']
  #allocation1 [shape = 'u32[144,128]{1,0:T(1,128)}', space=vmem, size = 0x12000, scoped, tag = 'internal scratch']
  %s0 = inlined_call_operand.hbm [shape: bf16[24,128], index: 0, kind: input, shape index: {}]
  %s1 = inlined_call_operand.hbm [shape: bf16[24,128], index: 1, kind: input, shape index: {}]
  %s2 = inlined_call_operand.hbm [shape: bf16[128,128], index: 2, kind: input, shape index: {}]
  %s3 = inlined_call_operand.hbm [shape: f32[1,128], index: 3, kind: input, shape index: {}]
  %s4 = inlined_call_operand.hbm [shape: bf16[128,128], index: 4, kind: input, shape index: {}]
  %s5 = inlined_call_operand.hbm [shape: f32[1,128], index: 5, kind: input, shape index: {}]
  %s6 = inlined_call_operand.hbm [shape: bf16[128,128], index: 6, kind: input, shape index: {}]
  %s7 = inlined_call_operand.hbm [shape: f32[1,128], index: 7, kind: input, shape index: {}]
  %s8 = inlined_call_operand.hbm [shape: f32[2], index: 8, kind: input, shape index: {}]
  %s9 = inlined_call_operand.hbm [shape: f32[24,1], index: 9, kind: output, shape index: {}]
  %s10 = sld [smem:[#allocation0]]
  $region82: #{tpu_custom_call.1} parent=0
    _
  %s12 = ssub.s32 1, %s10
  %s13 = scalar_select 0, %s12, %s10
  $region1: #{tpu_custom_call.1} parent=0
    #allocation2 [shape = 'u8[6144]{0}', space=vmem, size = 0x1800, scoped, tag = 'input window, operand 0, single buffered']
    #allocation3 [shape = 's32[1]{0}', space=sflag, size = 0x4, scoped, tag = 'scoped memory for tpu_custom_call.1']
    #allocation4 [shape = 's32[1]{0}', space=sflag, size = 0x4, scoped, tag = 'scoped memory for tpu_custom_call.1']
    #allocation5 [shape = 's32[1]{0}', space=sflag, size = 0x4, scoped, tag = 'scoped memory for tpu_custom_call.1']
    #allocation6 [shape = 'u8[6144]{0}', space=vmem, size = 0x1800, scoped, tag = 'input window, operand 1, single buffered']
    #allocation7 [shape = 's32[1]{0}', space=sflag, size = 0x4, scoped, tag = 'scoped memory for tpu_custom_call.1']
    #allocation8 [shape = 'u8[32768]{0}', space=vmem, size = 0x8000, scoped, tag = 'input window, operand 2, single buffered']
    #allocation9 [shape = 'u8[512]{0}', space=vmem, size = 0x400, scoped, tag = 'input window, operand 3, single buffered']
    #allocation10 [shape = 's32[1]{0}', space=sflag, size = 0x4, scoped, tag = 'scoped memory for tpu_custom_call.1']
    #allocation11 [shape = 'u8[32768]{0}', space=vmem, size = 0x8000, scoped, tag = 'input window, operand 4, single buffered']
    #allocation12 [shape = 'u8[512]{0}', space=vmem, size = 0x400, scoped, tag = 'input window, operand 5, single buffered']
    #allocation13 [shape = 's32[1]{0}', space=sflag, size = 0x4, scoped, tag = 'scoped memory for tpu_custom_call.1']
    #allocation14 [shape = 'u8[32768]{0}', space=vmem, size = 0x8000, scoped, tag = 'input window, operand 6, single buffered']
    #allocation15 [shape = 'u8[512]{0}', space=vmem, size = 0x400, scoped, tag = 'input window, operand 7, single buffered']
    #allocation16 [shape = 's32[1]{0}', space=sflag, size = 0x4, scoped, tag = 'scoped memory for tpu_custom_call.1']
    #allocation17 [shape = 'u8[512]{0}', space=smem, size = 0x200, scoped, tag = 'input window, operand 8, single buffered']
    #allocation18 [shape = 'u8[12288]{0}', space=vmem, size = 0x3000, scoped, tag = 'output window, operand 0, single buffered']
    %14 = vsyncpa [#allocation3], 0
    %15 = vsyncpa [#allocation7], 0
    %16 = vsyncpa [#allocation10], 0
    %17 = vsyncpa [#allocation13], 0
    %18 = vsyncpa [#allocation16], 0
    %19 = vsyncpa [#allocation5], 0
    %20 = vsyncpa [#allocation4], 0
    // Predicated region
    $region2: #{tpu_custom_call.1} parent=1 // pred_check
      _
    $region3: #{tpu_custom_call.1} parent=1 // pred_check_branch
      %22 = sbr.rel (0) target = $region5
    $region4: #{tpu_custom_call.1} parent=1 // pred_region
      %s24 = ssub.s32 192, 192
      %25 = vsyncadd [#allocation3], %s24
      %s26 = sshll.u32 [#allocation2], 4
      %s27 = int_to_ptr.vmem [resolvable:$true] %s26
      %32 = dma.hbm_to_vmem [thread:$0]  %s0, 192, %s27, [#allocation3], 64, 64, 4
    $region5: #{tpu_custom_call.1} parent=1 // pred_fallthru
      _
    // Predicated region
    $region6: #{tpu_custom_call.1} parent=1 // pred_check
      _
    $region7: #{tpu_custom_call.1} parent=1 // pred_check_branch
      %34 = sbr.rel (0) target = $region9
    $region8: #{tpu_custom_call.1} parent=1 // pred_region
      %s36 = ssub.s32 192, 192
      %37 = vsyncadd [#allocation7], %s36
      %s38 = sshll.u32 [#allocation6], 4
      %s39 = int_to_ptr.vmem [resolvable:$true] %s38
      %44 = dma.hbm_to_vmem [thread:$0]  %s1, 192, %s39, [#allocation7], 64, 64, 4
    $region9: #{tpu_custom_call.1} parent=1 // pred_fallthru
      _
    // Predicated region
    $region10: #{tpu_custom_call.1} parent=1 // pred_check
      _
    $region11: #{tpu_custom_call.1} parent=1 // pred_check_branch
      %46 = sbr.rel (0) target = $region13
    $region12: #{tpu_custom_call.1} parent=1 // pred_region
      %s48 = ssub.s32 1024, 1024
      %49 = vsyncadd [#allocation7], %s48
      %s50 = sshll.u32 [#allocation8], 4
      %s51 = int_to_ptr.vmem [resolvable:$true] %s50
      %56 = dma.hbm_to_vmem [thread:$0]  %s2, 1024, %s51, [#allocation7], 64, 64, 4
    $region13: #{tpu_custom_call.1} parent=1 // pred_fallthru
      _
    // Predicated region
    $region14: #{tpu_custom_call.1} parent=1 // pred_check
      _
    $region15: #{tpu_custom_call.1} parent=1 // pred_check_branch
      %58 = sbr.rel (0) target = $region17
    $region16: #{tpu_custom_call.1} parent=1 // pred_region
      %s60 = ssub.s32 16, 16
      %61 = vsyncadd [#allocation10], %s60
      %s63 = sshll.u32 [#allocation9], 4
      %s64 = int_to_ptr.vmem [resolvable:$true] %s63
      %66 = dma.hbm_to_vmem [thread:$0]  %s3, 16, %s64, [#allocation10]
    $region17: #{tpu_custom_call.1} parent=1 // pred_fallthru
      _
    // Predicated region
    $region18: #{tpu_custom_call.1} parent=1 // pred_check
      _
    $region19: #{tpu_custom_call.1} parent=1 // pred_check_branch
      %68 = sbr.rel (0) target = $region21
    $region20: #{tpu_custom_call.1} parent=1 // pred_region
      %s70 = ssub.s32 1024, 1024
      %71 = vsyncadd [#allocation10], %s70
      %s72 = sshll.u32 [#allocation11], 4
      %s73 = int_to_ptr.vmem [resolvable:$true] %s72
      %78 = dma.hbm_to_vmem [thread:$0]  %s4, 1024, %s73, [#allocation10], 64, 64, 4
    $region21: #{tpu_custom_call.1} parent=1 // pred_fallthru
      _
    // Predicated region
    $region22: #{tpu_custom_call.1} parent=1 // pred_check
      _
    $region23: #{tpu_custom_call.1} parent=1 // pred_check_branch
      %80 = sbr.rel (0) target = $region25
    $region24: #{tpu_custom_call.1} parent=1 // pred_region
      %s82 = ssub.s32 16, 16
      %83 = vsyncadd [#allocation13], %s82
      %s85 = sshll.u32 [#allocation12], 4
      %s86 = int_to_ptr.vmem [resolvable:$true] %s85
      %88 = dma.hbm_to_vmem [thread:$0]  %s5, 16, %s86, [#allocation13]
    $region25: #{tpu_custom_call.1} parent=1 // pred_fallthru
      _
    // Predicated region
    $region26: #{tpu_custom_call.1} parent=1 // pred_check
      _
    $region27: #{tpu_custom_call.1} parent=1 // pred_check_branch
      %90 = sbr.rel (0) target = $region29
    $region28: #{tpu_custom_call.1} parent=1 // pred_region
      %s92 = ssub.s32 1024, 1024
      %93 = vsyncadd [#allocation13], %s92
      %s94 = sshll.u32 [#allocation14], 4
      %s95 = int_to_ptr.vmem [resolvable:$true] %s94
      %100 = dma.hbm_to_vmem [thread:$0]  %s6, 1024, %s95, [#allocation13], 64, 64, 4
    $region29: #{tpu_custom_call.1} parent=1 // pred_fallthru
      _
    // Predicated region
    $region30: #{tpu_custom_call.1} parent=1 // pred_check
      _
    $region31: #{tpu_custom_call.1} parent=1 // pred_check_branch
      %102 = sbr.rel (0) target = $region33
    $region32: #{tpu_custom_call.1} parent=1 // pred_region
      %s104 = ssub.s32 16, 16
      %105 = vsyncadd [#allocation16], %s104
      %s107 = sshll.u32 [#allocation15], 4
      %s108 = int_to_ptr.vmem [resolvable:$true] %s107
      %110 = dma.hbm_to_vmem [thread:$0]  %s7, 16, %s108, [#allocation16]
    $region33: #{tpu_custom_call.1} parent=1 // pred_fallthru
      _
    // Predicated region
    $region34: #{tpu_custom_call.1} parent=1 // pred_check
      _
    $region35: #{tpu_custom_call.1} parent=1 // pred_check_branch
      %112 = sbr.rel (0) target = $region37
    $region36: #{tpu_custom_call.1} parent=1 // pred_region
      %s114 = ssub.s32 16, 16
      %115 = vsyncadd [#allocation5], %s114
      %118 = dma.hbm_to_smem %s8, 16, [#allocation17], [#allocation5]
    $region37: #{tpu_custom_call.1} parent=1 // pred_fallthru
      _
    // Predicated region
    $region38: #{tpu_custom_call.1} parent=1 // pred_check
      _
    $region39: #{tpu_custom_call.1} parent=1 // pred_check_branch
      %120 = sbr.rel (0) target = $region41
    $region40: #{tpu_custom_call.1} parent=1 // pred_region
      %121 = dma.done [#allocation3], 192
    $region41: #{tpu_custom_call.1} parent=1 // pred_fallthru
      _
    // Predicated region
    $region42: #{tpu_custom_call.1} parent=1 // pred_check
      _
    $region43: #{tpu_custom_call.1} parent=1 // pred_check_branch
      %123 = sbr.rel (0) target = $region45
    $region44: #{tpu_custom_call.1} parent=1 // pred_region
      %124 = dma.done [#allocation7], 192
    $region45: #{tpu_custom_call.1} parent=1 // pred_fallthru
      _
    // Predicated region
    $region46: #{tpu_custom_call.1} parent=1 // pred_check
      _
    $region47: #{tpu_custom_call.1} parent=1 // pred_check_branch
      %126 = sbr.rel (0) target = $region49
    $region48: #{tpu_custom_call.1} parent=1 // pred_region
      %127 = dma.done [#allocation7], 1024
    $region49: #{tpu_custom_call.1} parent=1 // pred_fallthru
      _
    // Predicated region
    $region50: #{tpu_custom_call.1} parent=1 // pred_check
      _
    $region51: #{tpu_custom_call.1} parent=1 // pred_check_branch
      %129 = sbr.rel (0) target = $region53
    $region52: #{tpu_custom_call.1} parent=1 // pred_region
      %130 = dma.done [#allocation10], 16
    $region53: #{tpu_custom_call.1} parent=1 // pred_fallthru
      _
    // Predicated region
    $region54: #{tpu_custom_call.1} parent=1 // pred_check
      _
    $region55: #{tpu_custom_call.1} parent=1 // pred_check_branch
      %132 = sbr.rel (0) target = $region57
    $region56: #{tpu_custom_call.1} parent=1 // pred_region
      %133 = dma.done [#allocation10], 1024
    $region57: #{tpu_custom_call.1} parent=1 // pred_fallthru
      _
    // Predicated region
    $region58: #{tpu_custom_call.1} parent=1 // pred_check
      _
    $region59: #{tpu_custom_call.1} parent=1 // pred_check_branch
      %135 = sbr.rel (0) target = $region61
    $region60: #{tpu_custom_call.1} parent=1 // pred_region
      %136 = dma.done [#allocation13], 16
    $region61: #{tpu_custom_call.1} parent=1 // pred_fallthru
      _
    // Predicated region
    $region62: #{tpu_custom_call.1} parent=1 // pred_check
      _
    $region63: #{tpu_custom_call.1} parent=1 // pred_check_branch
      %138 = sbr.rel (0) target = $region65
    $region64: #{tpu_custom_call.1} parent=1 // pred_region
      %139 = dma.done [#allocation13], 1024
    $region65: #{tpu_custom_call.1} parent=1 // pred_fallthru
      _
    // Predicated region
    $region66: #{tpu_custom_call.1} parent=1 // pred_check
      _
    $region67: #{tpu_custom_call.1} parent=1 // pred_check_branch
      %141 = sbr.rel (0) target = $region69
    $region68: #{tpu_custom_call.1} parent=1 // pred_region
      %142 = dma.done [#allocation16], 16
    $region69: #{tpu_custom_call.1} parent=1 // pred_fallthru
      _
    // Predicated region
    $region70: #{tpu_custom_call.1} parent=1 // pred_check
      _
    $region71: #{tpu_custom_call.1} parent=1 // pred_check_branch
      %144 = sbr.rel (0) target = $region73
    $region72: #{tpu_custom_call.1} parent=1 // pred_region
      %145 = dma.done [#allocation5], 16
    $region73: #{tpu_custom_call.1} parent=1 // pred_fallthru
      _
    %146 = sfence
    %s148 = sld [smem:[#allocation17]]
    %s149 = sld [smem:[#allocation17 + $0x1]]
    %v150 = vld [vmem:[#allocation2] sm:$0xf]
    %v151 = vld [vmem:[#allocation2 + $0x4] sm:$0xf]
    %v152 = vld [vmem:[#allocation2 + $0x8] sm:$0xf]
    %v153 = vld [vmem:[#allocation8] sm:$0xf]
    %v154 = vld [vmem:[#allocation8 + $0x4] sm:$0xf]
    %v155 = vld [vmem:[#allocation8 + $0x8] sm:$0xf]
    %v156 = vld [vmem:[#allocation8 + $0xc] sm:$0xf]
    %v157 = vld [vmem:[#allocation8 + $0x10] sm:$0xf]
    %v158 = vld [vmem:[#allocation8 + $0x14] sm:$0xf]
    %v159 = vld [vmem:[#allocation8 + $0x18] sm:$0xf]
    %v160 = vld [vmem:[#allocation8 + $0x1c] sm:$0xf]
    %v161 = vld [vmem:[#allocation8 + $0x20] sm:$0xf]
    %v162 = vld [vmem:[#allocation8 + $0x24] sm:$0xf]
    %v163 = vld [vmem:[#allocation8 + $0x28] sm:$0xf]
    %v164 = vld [vmem:[#allocation8 + $0x2c] sm:$0xf]
    %v165 = vld [vmem:[#allocation8 + $0x30] sm:$0xf]
    %v166 = vld [vmem:[#allocation8 + $0x34] sm:$0xf]
    %v167 = vld [vmem:[#allocation8 + $0x38] sm:$0xf]
    %v168 = vld [vmem:[#allocation8 + $0x3c] sm:$0xf]
    %v169 = vld [vmem:[#allocation9] sm:$0x1]
    %v171 = vlaneseq
    %v172 = vshrl.u32 %v171, 7
    %v173 = vsub.s32 0, %v172
    %v174 = vrot.slane %v169, %v173
    %v179 = vunpack.c.l.b16 %v150
    %v180 = vunpack.c.l.b16 %v151
    %v181 = vunpack.c.l.b16 %v152
    %v182 = vpack.c.b16 %v180, %v179
    %v183 = vpack.c.b16 %v181, %v181
    %v202 = vunpack.c.l.b16 %v153
    %v203 = vunpack.c.l.b16 %v154
    %v204 = vunpack.c.l.b16 %v155
    %v205 = vunpack.c.l.b16 %v156
    %v206 = vunpack.c.l.b16 %v157
    %v207 = vunpack.c.l.b16 %v158
    %v208 = vunpack.c.l.b16 %v159
    %v209 = vunpack.c.l.b16 %v160
    %v210 = vunpack.c.l.b16 %v161
    %v211 = vunpack.c.l.b16 %v162
    %v212 = vunpack.c.l.b16 %v163
    %v213 = vunpack.c.l.b16 %v164
    %v214 = vunpack.c.l.b16 %v165
    %v215 = vunpack.c.l.b16 %v166
    %v216 = vunpack.c.l.b16 %v167
    %v217 = vunpack.c.l.b16 %v168
    %v218 = vpack.c.b16 %v203, %v202
    %v219 = vpack.c.b16 %v205, %v204
    %v220 = vpack.c.b16 %v207, %v206
    %v221 = vpack.c.b16 %v209, %v208
    %v222 = vpack.c.b16 %v211, %v210
    %v223 = vpack.c.b16 %v213, %v212
    %v224 = vpack.c.b16 %v215, %v214
    %v225 = vpack.c.b16 %v217, %v216
    %234 = vmatprep.subr.bf16.mxu0 0
    %235 = vmatpush1.bf16.msra.mxu0 %v218
    %236 = vmatprep.subr.bf16.mxu0 0
    %237 = vmatpush1.bf16.msra.mxu0 %v219
    %238 = vmatprep.subr.bf16.mxu0 0
    %239 = vmatpush1.bf16.msra.mxu0 %v220
    %240 = vmatprep.subr.bf16.mxu0 0
    %241 = vmatpush1.bf16.msra.mxu0 %v221
    %242 = vmatprep.subr.bf16.mxu0 0
    %243 = vmatpush1.bf16.msra.mxu0 %v222
    %244 = vmatprep.subr.bf16.mxu0 0
    %245 = vmatpush1.bf16.msra.mxu0 %v223
    %246 = vmatprep.subr.bf16.mxu0 0
    %247 = vmatpush1.bf16.msra.mxu0 %v224
    %248 = vmatprep.subr.bf16.mxu0 0
    %249 = vmatpush1.bf16.msra.mxu0 %v225
    %250 = vmatprep.subr.bf16.mxu0 0
    %251 = vmatpush1.bf16.msra.mxu0 0
    %252 = vmatprep.subr.bf16.mxu0 0
    %253 = vmatpush1.bf16.msra.mxu0 0
    %254 = vmatprep.subr.bf16.mxu0 0
    %255 = vmatpush1.bf16.msra.mxu0 0
    %256 = vmatprep.subr.bf16.mxu0 0
    %257 = vmatpush1.bf16.msra.mxu0 0
    %258 = vmatprep.subr.bf16.mxu0 0
    %259 = vmatpush1.bf16.msra.mxu0 0
    %260 = vmatprep.subr.bf16.mxu0 0
    %261 = vmatpush1.bf16.msra.mxu0 0
    %262 = vmatprep.subr.bf16.mxu0 0
    %263 = vmatpush1.bf16.msra.mxu0 0
    %264 = vmatprep.subr.bf16.mxu0 0
    %265 = vmatpush1.bf16.msra.mxu0 0
    %266 = vmatprep.mubr.bf16.mxu0 0
    %267 = vmatmul.mubr.bf16.gmra.mrb[0].mxu0 %v182
    %v268 = vpop.f32.mrb[0].mxu0
    %v269 = vadd.f32 %v174, %v268
    %v270 = vpop.f32.mrb[0].mxu0
    %v271 = vpop.f32.mrb[0].mxu0
    %v272 = vadd.f32 %v174, %v271
    %v273 = vpop.f32.mrb[0].mxu0
    %274 = vmatprep.mubr.bf16.mxu0 0
    %275 = vmatmul.mubr.bf16.gmra.mrb[0].mxu0 %v183
    %v276 = vpop.f32.mrb[0].mxu0
    %v277 = vadd.f32 %v174, %v276
    %v278 = vpop.f32.mrb[0].mxu0
    %v279 = vpop.f32.mrb[0].mxu0
    %v280 = vpop.f32.mrb[0].mxu0
    %281 = vdwg.mxu0
    %vm282 = vcmp.ge.f32.partialorder %v269, 0.0
    %vm283 = vcmp.ge.f32.partialorder %v272, 0.0
    %vm284 = vcmp.ge.f32.partialorder %v277, 0.0
    %v285 = vstv %s148
    %v286 = vmul.f32 %v285, %v269
    %v287 = vmul.f32 %v285, %v272
    %v288 = vmul.f32 %v285, %v277
    %v289 = vsel %vm282, %v269, %v286
    %v290 = vsel %vm283, %v272, %v287
    %v291 = vsel %vm284, %v277, %v288
    %v292 = vpack.c.bf16 %v290, %v289
    %v293 = vpack.c.bf16 %v291, %v291
    %v294 = vld [vmem:[#allocation11] sm:$0xf]
    %v295 = vld [vmem:[#allocation11 + $0x4] sm:$0xf]
    %v296 = vld [vmem:[#allocation11 + $0x8] sm:$0xf]
    %v297 = vld [vmem:[#allocation11 + $0xc] sm:$0xf]
    %v298 = vld [vmem:[#allocation11 + $0x10] sm:$0xf]
    %v299 = vld [vmem:[#allocation11 + $0x14] sm:$0xf]
    %v300 = vld [vmem:[#allocation11 + $0x18] sm:$0xf]
    %v301 = vld [vmem:[#allocation11 + $0x1c] sm:$0xf]
    %v302 = vld [vmem:[#allocation11 + $0x20] sm:$0xf]
    %v303 = vld [vmem:[#allocation11 + $0x24] sm:$0xf]
    %v304 = vld [vmem:[#allocation11 + $0x28] sm:$0xf]
    %v305 = vld [vmem:[#allocation11 + $0x2c] sm:$0xf]
    %v306 = vld [vmem:[#allocation11 + $0x30] sm:$0xf]
    %v307 = vld [vmem:[#allocation11 + $0x34] sm:$0xf]
    %v308 = vld [vmem:[#allocation11 + $0x38] sm:$0xf]
    %v309 = vld [vmem:[#allocation11 + $0x3c] sm:$0xf]
    %v310 = vld [vmem:[#allocation12] sm:$0x1]
    %v312 = vlaneseq
    %v313 = vshrl.u32 %v312, 7
    %v314 = vsub.s32 0, %v313
    %v315 = vrot.slane %v310, %v314
    %v333 = vunpack.c.l.b16 %v294
    %v334 = vunpack.c.l.b16 %v295
    %v335 = vunpack.c.l.b16 %v296
    %v336 = vunpack.c.l.b16 %v297
    %v337 = vunpack.c.l.b16 %v298
    %v338 = vunpack.c.l.b16 %v299
    %v339 = vunpack.c.l.b16 %v300
    %v340 = vunpack.c.l.b16 %v301
    %v341 = vunpack.c.l.b16 %v302
    %v342 = vunpack.c.l.b16 %v303
    %v343 = vunpack.c.l.b16 %v304
    %v344 = vunpack.c.l.b16 %v305
    %v345 = vunpack.c.l.b16 %v306
    %v346 = vunpack.c.l.b16 %v307
    %v347 = vunpack.c.l.b16 %v308
    %v348 = vunpack.c.l.b16 %v309
    %v349 = vpack.c.b16 %v334, %v333
    %v350 = vpack.c.b16 %v336, %v335
    %v351 = vpack.c.b16 %v338, %v337
    %v352 = vpack.c.b16 %v340, %v339
    %v353 = vpack.c.b16 %v342, %v341
    %v354 = vpack.c.b16 %v344, %v343
    %v355 = vpack.c.b16 %v346, %v345
    %v356 = vpack.c.b16 %v348, %v347
    %365 = vmatprep.subr.bf16.mxu0 0
    %366 = vmatpush1.bf16.msra.mxu0 %v349
    %367 = vmatprep.subr.bf16.mxu0 0
    %368 = vmatpush1.bf16.msra.mxu0 %v350
    %369 = vmatprep.subr.bf16.mxu0 0
    %370 = vmatpush1.bf16.msra.mxu0 %v351
    %371 = vmatprep.subr.bf16.mxu0 0
    %372 = vmatpush1.bf16.msra.mxu0 %v352
    %373 = vmatprep.subr.bf16.mxu0 0
    %374 = vmatpush1.bf16.msra.mxu0 %v353
    %375 = vmatprep.subr.bf16.mxu0 0
    %376 = vmatpush1.bf16.msra.mxu0 %v354
    %377 = vmatprep.subr.bf16.mxu0 0
    %378 = vmatpush1.bf16.msra.mxu0 %v355
    %379 = vmatprep.subr.bf16.mxu0 0
    %380 = vmatpush1.bf16.msra.mxu0 %v356
    %381 = vmatprep.subr.bf16.mxu0 0
    %382 = vmatpush1.bf16.msra.mxu0 0
    %383 = vmatprep.subr.bf16.mxu0 0
    %384 = vmatpush1.bf16.msra.mxu0 0
    %385 = vmatprep.subr.bf16.mxu0 0
    %386 = vmatpush1.bf16.msra.mxu0 0
    %387 = vmatprep.subr.bf16.mxu0 0
    %388 = vmatpush1.bf16.msra.mxu0 0
    %389 = vmatprep.subr.bf16.mxu0 0
    %390 = vmatpush1.bf16.msra.mxu0 0
    %391 = vmatprep.subr.bf16.mxu0 0
    %392 = vmatpush1.bf16.msra.mxu0 0
    %393 = vmatprep.subr.bf16.mxu0 0
    %394 = vmatpush1.bf16.msra.mxu0 0
    %395 = vmatprep.subr.bf16.mxu0 0
    %396 = vmatpush1.bf16.msra.mxu0 0
    %397 = vmatprep.mubr.bf16.mxu0 0
    %398 = vmatmul.mubr.bf16.gmra.mrb[0].mxu0 %v292
    %v399 = vpop.f32.mrb[0].mxu0
    %v400 = vadd.f32 %v315, %v399
    %v401 = vpop.f32.mrb[0].mxu0
    %v402 = vpop.f32.mrb[0].mxu0
    %v403 = vadd.f32 %v315, %v402
    %v404 = vpop.f32.mrb[0].mxu0
    %405 = vmatprep.mubr.bf16.mxu0 0
    %406 = vmatmul.mubr.bf16.gmra.mrb[0].mxu0 %v293
    %v407 = vpop.f32.mrb[0].mxu0
    %v408 = vadd.f32 %v315, %v407
    %v409 = vpop.f32.mrb[0].mxu0
    %v410 = vpop.f32.mrb[0].mxu0
    %v411 = vpop.f32.mrb[0].mxu0
    %412 = vdwg.mxu0
    %vm413 = vcmp.ge.f32.partialorder %v400, 0.0
    %vm414 = vcmp.ge.f32.partialorder %v403, 0.0
    %vm415 = vcmp.ge.f32.partialorder %v408, 0.0
    %v416 = vstv %s149
    %v417 = vmul.f32 %v416, %v400
    %v418 = vmul.f32 %v416, %v403
    %v419 = vmul.f32 %v416, %v408
    %v420 = vsel %vm413, %v400, %v417
    %v421 = vsel %vm414, %v403, %v418
    %v422 = vsel %vm415, %v408, %v419
    %v423 = vpack.c.bf16 %v421, %v420
    %v424 = vpack.c.bf16 %v422, %v422
    %v425 = vld [vmem:[#allocation14] sm:$0xf]
    %v426 = vld [vmem:[#allocation14 + $0x4] sm:$0xf]
    %v427 = vld [vmem:[#allocation14 + $0x8] sm:$0xf]
    %v428 = vld [vmem:[#allocation14 + $0xc] sm:$0xf]
    %v429 = vld [vmem:[#allocation14 + $0x10] sm:$0xf]
    %v430 = vld [vmem:[#allocation14 + $0x14] sm:$0xf]
    %v431 = vld [vmem:[#allocation14 + $0x18] sm:$0xf]
    %v432 = vld [vmem:[#allocation14 + $0x1c] sm:$0xf]
    %v433 = vld [vmem:[#allocation14 + $0x20] sm:$0xf]
    %v434 = vld [vmem:[#allocation14 + $0x24] sm:$0xf]
    %v435 = vld [vmem:[#allocation14 + $0x28] sm:$0xf]
    %v436 = vld [vmem:[#allocation14 + $0x2c] sm:$0xf]
    %v437 = vld [vmem:[#allocation14 + $0x30] sm:$0xf]
    %v438 = vld [vmem:[#allocation14 + $0x34] sm:$0xf]
    %v439 = vld [vmem:[#allocation14 + $0x38] sm:$0xf]
    %v440 = vld [vmem:[#allocation14 + $0x3c] sm:$0xf]
    %v441 = vld [vmem:[#allocation15] sm:$0x1]
    %v443 = vlaneseq
    %v444 = vshrl.u32 %v443, 7
    %v445 = vsub.s32 0, %v444
    %v446 = vrot.slane %v441, %v445
    %v464 = vunpack.c.l.b16 %v425
    %v465 = vunpack.c.l.b16 %v426
    %v466 = vunpack.c.l.b16 %v427
    %v467 = vunpack.c.l.b16 %v428
    %v468 = vunpack.c.l.b16 %v429
    %v469 = vunpack.c.l.b16 %v430
    %v470 = vunpack.c.l.b16 %v431
    %v471 = vunpack.c.l.b16 %v432
    %v472 = vunpack.c.l.b16 %v433
    %v473 = vunpack.c.l.b16 %v434
    %v474 = vunpack.c.l.b16 %v435
    %v475 = vunpack.c.l.b16 %v436
    %v476 = vunpack.c.l.b16 %v437
    %v477 = vunpack.c.l.b16 %v438
    %v478 = vunpack.c.l.b16 %v439
    %v479 = vunpack.c.l.b16 %v440
    %v480 = vpack.c.b16 %v465, %v464
    %v481 = vpack.c.b16 %v467, %v466
    %v482 = vpack.c.b16 %v469, %v468
    %v483 = vpack.c.b16 %v471, %v470
    %v484 = vpack.c.b16 %v473, %v472
    %v485 = vpack.c.b16 %v475, %v474
    %v486 = vpack.c.b16 %v477, %v476
    %v487 = vpack.c.b16 %v479, %v478
    %496 = vmatprep.subr.bf16.mxu0 0
    %497 = vmatpush1.bf16.msra.mxu0 %v480
    %498 = vmatprep.subr.bf16.mxu0 0
    %499 = vmatpush1.bf16.msra.mxu0 %v481
    %500 = vmatprep.subr.bf16.mxu0 0
    %501 = vmatpush1.bf16.msra.mxu0 %v482
    %502 = vmatprep.subr.bf16.mxu0 0
    %503 = vmatpush1.bf16.msra.mxu0 %v483
    %504 = vmatprep.subr.bf16.mxu0 0
    %505 = vmatpush1.bf16.msra.mxu0 %v484
    %506 = vmatprep.subr.bf16.mxu0 0
    %507 = vmatpush1.bf16.msra.mxu0 %v485
    %508 = vmatprep.subr.bf16.mxu0 0
    %509 = vmatpush1.bf16.msra.mxu0 %v486
    %510 = vmatprep.subr.bf16.mxu0 0
    %511 = vmatpush1.bf16.msra.mxu0 %v487
    %512 = vmatprep.subr.bf16.mxu0 0
    %513 = vmatpush1.bf16.msra.mxu0 0
    %514 = vmatprep.subr.bf16.mxu0 0
    %515 = vmatpush1.bf16.msra.mxu0 0
    %516 = vmatprep.subr.bf16.mxu0 0
    %517 = vmatpush1.bf16.msra.mxu0 0
    %518 = vmatprep.subr.bf16.mxu0 0
    %519 = vmatpush1.bf16.msra.mxu0 0
    %520 = vmatprep.subr.bf16.mxu0 0
    %521 = vmatpush1.bf16.msra.mxu0 0
    %522 = vmatprep.subr.bf16.mxu0 0
    %523 = vmatpush1.bf16.msra.mxu0 0
    %524 = vmatprep.subr.bf16.mxu0 0
    %525 = vmatpush1.bf16.msra.mxu0 0
    %526 = vmatprep.subr.bf16.mxu0 0
    %527 = vmatpush1.bf16.msra.mxu0 0
    %528 = vmatprep.mubr.bf16.mxu0 0
    %529 = vmatmul.mubr.bf16.gmra.mrb[0].mxu0 %v423
    %v530 = vpop.f32.mrb[0].mxu0
    %v531 = vadd.f32 %v446, %v530
    %v532 = vpop.f32.mrb[0].mxu0
    %v533 = vpop.f32.mrb[0].mxu0
    %v534 = vadd.f32 %v446, %v533
    %v535 = vpop.f32.mrb[0].mxu0
    %536 = vmatprep.mubr.bf16.mxu0 0
    %537 = vmatmul.mubr.bf16.gmra.mrb[0].mxu0 %v424
    %v538 = vpop.f32.mrb[0].mxu0
    %v539 = vadd.f32 %v446, %v538
    %v540 = vpop.f32.mrb[0].mxu0
    %v541 = vpop.f32.mrb[0].mxu0
    %v542 = vpop.f32.mrb[0].mxu0
    %543 = vdwg.mxu0
    %v544 = vld [vmem:[#allocation6] sm:$0xf]
    %v545 = vld [vmem:[#allocation6 + $0x4] sm:$0xf]
    %v546 = vld [vmem:[#allocation6 + $0x8] sm:$0xf]
    %v547 = vunpack.c.l.bf16 %v544
    %v548 = vunpack.c.l.bf16 %v545
    %v549 = vunpack.c.l.bf16 %v546
    %v550 = vmul.f32 %v531, %v531
    %v551 = vmul.f32 %v534, %v534
    %v552 = vmul.f32 %v539, %v539
    %553 = vadd.xlane.f32.xlu0 %v550
    %v554 = vpop.xlane.xlu0 %553
    %555 = vadd.xlane.f32.xlu0 %v551
    %v556 = vpop.xlane.xlu0 %555
    %557 = vadd.xlane.f32.xlu0 %v552
    %v558 = vpop.xlane.xlu0 %557
    %v559 = vmax.f32 %v554, 1e-24
    %v560 = vmax.f32 %v556, 1e-24
    %v561 = vmax.f32 %v558, 1e-24
    %v562 = vrsqrt.pop %v559
    %v563 = vrsqrt.pop %v560
    %v564 = vrsqrt.pop %v561
    %v565 = vmul.f32 %v547, %v547
    %v566 = vmul.f32 %v548, %v548
    %v567 = vmul.f32 %v549, %v549
    %568 = vadd.xlane.f32.xlu0 %v565
    %v569 = vpop.xlane.xlu0 %568
    %570 = vadd.xlane.f32.xlu0 %v566
    %v571 = vpop.xlane.xlu0 %570
    %572 = vadd.xlane.f32.xlu0 %v567
    %v573 = vpop.xlane.xlu0 %572
    %v574 = vmax.f32 %v569, 1e-24
    %v575 = vmax.f32 %v571, 1e-24
    %v576 = vmax.f32 %v573, 1e-24
    %v577 = vrsqrt.pop %v574
    %v578 = vrsqrt.pop %v575
    %v579 = vrsqrt.pop %v576
    %v580 = vmul.f32 %v531, %v547
    %v581 = vmul.f32 %v534, %v548
    %v582 = vmul.f32 %v539, %v549
    %583 = vadd.xlane.f32.xlu0 %v580
    %v584 = vpop.xlane.xlu0 %583
    %585 = vadd.xlane.f32.xlu0 %v581
    %v586 = vpop.xlane.xlu0 %585
    %587 = vadd.xlane.f32.xlu0 %v582
    %v588 = vpop.xlane.xlu0 %587
    %v589 = vmul.f32 %v584, %v562
    %v590 = vmul.f32 %v586, %v563
    %v591 = vmul.f32 %v588, %v564
    %v592 = vmul.f32 %v589, %v577
    %v593 = vmul.f32 %v590, %v578
    %v594 = vmul.f32 %v591, %v579
    %v595 = vsub.f32 1.0, %v592
    %v596 = vsub.f32 1.0, %v593
    %v597 = vsub.f32 1.0, %v594
    %v598 = vmul.f32 %v595, %v595
    %v599 = vmul.f32 %v596, %v596
    %v600 = vmul.f32 %v597, %v597
    %vm601 = vcmask 7168
    %602 = vst.msk [vmem:[#allocation18] sm:$0xff] %vm601, %v598
    %603 = vst.msk [vmem:[#allocation18 + $0x8] sm:$0xff] %vm601, %v599
    %604 = vst.msk [vmem:[#allocation18 + $0x10] sm:$0xff] %vm601, %v600
    // Predicated region
    $region74: #{tpu_custom_call.1} parent=1 // pred_check
      _
    $region75: #{tpu_custom_call.1} parent=1 // pred_check_branch
      %606 = sbr.rel (0) target = $region77
    $region76: #{tpu_custom_call.1} parent=1 // pred_region
      %s608 = ssub.s32 384, 384
      %609 = vsyncadd [#allocation4], %s608
      %s610 = sshll.u32 [#allocation18], 4
      %s611 = int_to_ptr.vmem [resolvable:$true] %s610
      %616 = dma.vmem_to_hbm [thread:$0]  %s611, 384, %s9, [#allocation4], 128, 128, 8
    $region77: #{tpu_custom_call.1} parent=1 // pred_fallthru
      _
    // Predicated region
    $region78: #{tpu_custom_call.1} parent=1 // pred_check
      _
    $region79: #{tpu_custom_call.1} parent=1 // pred_check_branch
      %618 = sbr.rel (0) target = $region81
    $region80: #{tpu_custom_call.1} parent=1 // pred_region
      %619 = dma.done [#allocation4], 384
    $region81: #{tpu_custom_call.1} parent=1 // pred_fallthru
      _
    %620 = vsyncpa [#allocation3], 1
    %621 = vsyncpa [#allocation7], 1
    %622 = vsyncpa [#allocation10], 1
    %623 = vsyncpa [#allocation13], 1
    %624 = vsyncpa [#allocation16], 1
    %625 = vsyncpa [#allocation4], 1
    %626 = vsyncpa [#allocation5], 1

</llo_original>
